<compile_context>
chip_gen: v7x
topology: tpu7x:2x2x1
jax: 0.10.0
libtpu: 0.0.40
codegen_flags: <defaults>
</compile_context>

<pallas_src>
import functools

import jax
import jax.numpy as jnp
from jax.experimental import pallas as pl
from jax.experimental.pallas import tpu as pltpu

LEAKY_SLOPE = 0.01
BN_EPS = 1e-5
LANE = 128


def _round_up(n, m):
    return ((n + m - 1) // m) * m


def _leaky_relu(x):
    return jnp.where(x >= 0, x, LEAKY_SLOPE * x)


def _bn_train_fused(h, gamma, beta, row_mask, inv_n):
    """Training-mode BN, single reduction sweep, gamma/beta folded to scale/shift.

    h: (Bp, F) f32; row_mask: (Bp, 1) f32 (1 = real row, 0 = pad) or None when
    the batch is already sublane-aligned; inv_n: python float 1/B (real batch).
    NOTE: one-sweep E[x^2]-E[x]^2 form (clamped at 0) -- fine in f32 at these
    scales; revisit (two-pass / pre-shifted sweep) for much deeper configs.
    """
    hm = h if row_mask is None else h * row_mask
    s1 = jnp.sum(hm, axis=0, keepdims=True)           # sum(x)
    s2 = jnp.sum(hm * hm, axis=0, keepdims=True)      # sum(x^2)
    mean = s1 * inv_n
    var = jnp.maximum(s2 * inv_n - mean * mean, 0.0)  # biased variance
    scale = gamma * jax.lax.rsqrt(var + BN_EPS)
    shift = beta - mean * scale
    return h * scale + shift                          # one FMA per element


def mlp_kernel(x_ref, w1_ref, w2_ref, w3_ref, vec_ref, o_ref, *,
               n_valid, h1p, h2p, outp, compute_dtype, mask_rows):
    # Unpack the coalesced small-vector slab (static, lane-aligned slices).
    v = vec_ref[...]                                  # (8, h1p+h2p+outp) f32
    b1, g1, be1 = v[0:1, 0:h1p], v[1:2, 0:h1p], v[2:3, 0:h1p]
    b2 = v[0:1, h1p:h1p + h2p]
    g2 = v[1:2, h1p:h1p + h2p]
    be2 = v[2:3, h1p:h1p + h2p]
    b3 = v[0:1, h1p + h2p:h1p + h2p + outp]

    inv_n = 1.0 / n_valid

    if mask_rows:
        bp = x_ref.shape[0]
        rows = jax.lax.broadcasted_iota(jnp.int32, (bp, 1), 0)
        row_mask = (rows < n_valid).astype(jnp.float32)
    else:
        row_mask = None  # batch already sublane-aligned: skip the mask muls

    # fc1 -> leaky_relu -> bn1   (MXU dot in compute_dtype, f32 accumulation)
    h = jnp.dot(x_ref[...], w1_ref[...],
                preferred_element_type=jnp.float32) + b1
    h = _leaky_relu(h)
    h = _bn_train_fused(h, g1, be1, row_mask, inv_n)

    # fc2 -> leaky_relu -> bn2
    h = jnp.dot(h.astype(compute_dtype), w2_ref[...],
                preferred_element_type=jnp.float32) + b2
    h = _leaky_relu(h)
    h = _bn_train_fused(h, g2, be2, row_mask, inv_n)

    # fc3 -> sigmoid
    h = jnp.dot(h.astype(compute_dtype), w3_ref[...],
                preferred_element_type=jnp.float32) + b3
    o_ref[...] = jax.nn.sigmoid(h).astype(o_ref.dtype)


def prepare_params(params, *, compute_dtype=jnp.float32):
    """Pad + cast the parameter pytree ONCE; reuse across forward calls.

    Weights are stored transposed (in, out).  Feature / output lane dims pad
    to 128; contraction (sublane) dims pad only to the MXU K granularity
    (8 for f32, 16 for bf16).  Default f32 (preferred on v5e); pass
    compute_dtype=jnp.bfloat16 for the bf16-MXU path on v6e/v7x.
    """
    in_f, h1 = params["w1"].shape
    h2 = params["w2"].shape[1]
    out_f = params["w3"].shape[1]

    kpack = 16 if jnp.dtype(compute_dtype).itemsize == 2 else 8
    inp = _round_up(in_f, kpack)
    h1p = _round_up(h1, LANE)
    h2p = _round_up(h2, LANE)
    outp = _round_up(out_f, LANE)

    def pad2(a, rows, cols):
        return jnp.pad(a, ((0, rows - a.shape[0]), (0, cols - a.shape[1])))

    w1 = pad2(params["w1"], inp, h1p).astype(compute_dtype)
    w2 = pad2(params["w2"], h1p, h2p).astype(compute_dtype)
    w3 = pad2(params["w3"], h2p, outp).astype(compute_dtype)

    # Single (8, h1p+h2p+outp) f32 slab for all biases / BN affine params:
    #   row 0: [b1 | b2 | b3], row 1: [g1 | g2 | 0], row 2: [be1 | be2 | 0].
    vecs = jnp.zeros((8, h1p + h2p + outp), jnp.float32)
    vecs = vecs.at[0, :h1].set(params["b1"].reshape(-1))
    vecs = vecs.at[1, :h1].set(params["g1"].reshape(-1))
    vecs = vecs.at[2, :h1].set(params["be1"].reshape(-1))
    vecs = vecs.at[0, h1p:h1p + h2].set(params["b2"].reshape(-1))
    vecs = vecs.at[1, h1p:h1p + h2].set(params["g2"].reshape(-1))
    vecs = vecs.at[2, h1p:h1p + h2].set(params["be2"].reshape(-1))
    vecs = vecs.at[0, h1p + h2p:h1p + h2p + out_f].set(params["b3"].reshape(-1))

    return {
        "w1": w1, "w2": w2, "w3": w3, "vecs": vecs,
        "compute_dtype": jnp.dtype(compute_dtype),
        "kpack": kpack,
        "dims": (in_f, h1, h2, out_f),
        "padded": (inp, h1p, h2p, outp),
    }


def mlp_forward(x, prep):
    """x: (B, in_features) float32. prep: output of prepare_params()."""
    B, in_f = x.shape
    in_f0, h1, h2, out_f = prep["dims"]
    inp, h1p, h2p, outp = prep["padded"]
    assert in_f == in_f0, "input feature dim mismatch with prepared params"
    compute_dtype = prep["compute_dtype"]
    kpack = prep["kpack"]

    bp = _round_up(B, kpack)          # 8-row (f32) / 16-row (bf16) alignment
    x_p = jnp.pad(x, ((0, bp - B), (0, inp - in_f))).astype(compute_dtype)

    args = (x_p, prep["w1"], prep["w2"], prep["w3"], prep["vecs"])
    vmem_spec = pl.BlockSpec(memory_space=pltpu.MemorySpace.VMEM)

    in_bytes = sum(int(a.size) * a.dtype.itemsize for a in args)
    out_bytes = bp * outp * 4
    act_bytes = 4 * bp * (h1p + h2p) * 4          # headroom for f32 temps
    vmem_limit = max(2 << 20,
                     _round_up(2 * (in_bytes + out_bytes + act_bytes), 1 << 20))

    cost = pl.CostEstimate(
        flops=2 * B * (in_f * h1 + h1 * h2 + h2 * out_f),
        transcendentals=B * out_f + h1 + h2,      # sigmoid + 1 rsqrt per BN feat
        bytes_accessed=in_bytes + out_bytes,
    )

    kernel = functools.partial(
        mlp_kernel,
        n_valid=B, h1p=h1p, h2p=h2p, outp=outp,
        compute_dtype=compute_dtype, mask_rows=(bp != B))

    out_padded = pl.pallas_call(
        kernel,
        out_shape=jax.ShapeDtypeStruct((bp, outp), jnp.float32),
        in_specs=[vmem_spec] * len(args),
        out_specs=vmem_spec,
        compiler_params=pltpu.CompilerParams(vmem_limit_bytes=vmem_limit),
        cost_estimate=cost,
    )(*args)

    return out_padded[:B, :out_f]


def init_params(key, in_features, h1, h2, out_features):
    """Mirrors nn.Linear init (uniform(-1/sqrt(fan_in), +)) and BatchNorm1d
    (gamma=1, beta=0). Linear weights stored transposed: (in, out)."""
    ks = jax.random.split(key, 6)

    def lin(kw, kb, fan_in, fan_out):
        bound = 1.0 / jnp.sqrt(fan_in)
        w = jax.random.uniform(kw, (fan_in, fan_out), jnp.float32, -bound, bound)
        b = jax.random.uniform(kb, (1, fan_out), jnp.float32, -bound, bound)
        return w, b

    w1, b1 = lin(ks[0], ks[1], in_features, h1)
    w2, b2 = lin(ks[2], ks[3], h1, h2)
    w3, b3 = lin(ks[4], ks[5], h2, out_features)
    return {
        "w1": w1, "b1": b1,
        "g1": jnp.ones((1, h1), jnp.float32), "be1": jnp.zeros((1, h1), jnp.float32),
        "w2": w2, "b2": b2,
        "g2": jnp.ones((1, h2), jnp.float32), "be2": jnp.zeros((1, h2), jnp.float32),
        "w3": w3, "b3": b3,
    }


def mlp_reference(x, p):
    """Pure-JAX f32 reference matching PyTorch training-mode forward."""

    def bn(h, gamma, beta):
        mean = jnp.mean(h, axis=0, keepdims=True)
        var = jnp.mean((h - mean) ** 2, axis=0, keepdims=True)
        return (h - mean) * jax.lax.rsqrt(var + BN_EPS) * gamma + beta

    h = bn(_leaky_relu(x @ p["w1"] + p["b1"]), p["g1"], p["be1"])
    h = bn(_leaky_relu(h @ p["w2"] + p["b2"]), p["g2"], p["be2"])
    return jax.nn.sigmoid(h @ p["w3"] + p["b3"])


if __name__ == "__main__":
    B, IN, H1, H2, OUT = 8, 16, 32, 32, 8
    key = jax.random.PRNGKey(0)
    kx, kp = jax.random.split(key)
    x = jax.random.normal(kx, (B, IN), jnp.float32)
    params = init_params(kp, IN, H1, H2, OUT)

    ref = mlp_reference(x, params)

    # f32 path (default; preferred on v5e): faithful to the module semantics.
    prep_f32 = prepare_params(params, compute_dtype=jnp.float32)
    out_f32 = jax.block_until_ready(mlp_forward(x, prep_f32))
    assert out_f32.shape == (B, OUT)
    assert jnp.max(jnp.abs(out_f32 - ref)) < 1e-4, "f32 kernel mismatch vs reference"

    # bf16-MXU path (v6e/v7x): 16-aligned batch/K pads, f32 accumulation + f32 BN.
    prep_bf16 = prepare_params(params, compute_dtype=jnp.bfloat16)
    out_bf16 = jax.block_until_ready(mlp_forward(x, prep_bf16))
    assert out_bf16.shape == (B, OUT)
    assert jnp.max(jnp.abs(out_bf16 - ref)) < 5e-2, "bf16 kernel drifted too far"

    print("KERNEL_OK")
</pallas_src>

<mosaic_0001>
module attributes {stable_mosaic.version = 11 : i64} {
  func.func @mlp_kernel(%arg0: memref<8x16xf32, #tpu.memory_space<vmem>>, %arg1: memref<16x128xf32, #tpu.memory_space<vmem>>, %arg2: memref<128x128xf32, #tpu.memory_space<vmem>>, %arg3: memref<128x128xf32, #tpu.memory_space<vmem>>, %arg4: memref<8x384xf32, #tpu.memory_space<vmem>>, %arg5: memref<8x128xf32, #tpu.memory_space<vmem>>) attributes {dimension_semantics = [], scalar_prefetch = 0 : i64, scratch_operands = 0 : i64, tpu.core_type = #tpu.core_type<tc>} {
    %c0 = arith.constant 0 : index
    %c0_0 = arith.constant 0 : index
    %0 = vector.load %arg4[%c0, %c0_0] : memref<8x384xf32, #tpu.memory_space<vmem>>, vector<8x384xf32>
    %1 = vector.extract_strided_slice %0 {offsets = [0, 0], sizes = [1, 128], strides = [1, 1]} : vector<8x384xf32> to vector<1x128xf32>
    %2 = vector.extract_strided_slice %0 {offsets = [1, 0], sizes = [1, 128], strides = [1, 1]} : vector<8x384xf32> to vector<1x128xf32>
    %3 = vector.extract_strided_slice %0 {offsets = [2, 0], sizes = [1, 128], strides = [1, 1]} : vector<8x384xf32> to vector<1x128xf32>
    %4 = vector.extract_strided_slice %0 {offsets = [0, 128], sizes = [1, 128], strides = [1, 1]} : vector<8x384xf32> to vector<1x128xf32>
    %5 = vector.extract_strided_slice %0 {offsets = [1, 128], sizes = [1, 128], strides = [1, 1]} : vector<8x384xf32> to vector<1x128xf32>
    %6 = vector.extract_strided_slice %0 {offsets = [2, 128], sizes = [1, 128], strides = [1, 1]} : vector<8x384xf32> to vector<1x128xf32>
    %7 = vector.extract_strided_slice %0 {offsets = [0, 256], sizes = [1, 128], strides = [1, 1]} : vector<8x384xf32> to vector<1x128xf32>
    %c0_1 = arith.constant 0 : index
    %c0_2 = arith.constant 0 : index
    %8 = vector.load %arg0[%c0_1, %c0_2] : memref<8x16xf32, #tpu.memory_space<vmem>>, vector<8x16xf32>
    %c0_3 = arith.constant 0 : index
    %c0_4 = arith.constant 0 : index
    %9 = vector.load %arg1[%c0_3, %c0_4] : memref<16x128xf32, #tpu.memory_space<vmem>>, vector<16x128xf32>
    %cst = arith.constant dense<0.000000e+00> : vector<8x128xf32>
    %10 = tpu.matmul %8, %9, %cst {dimension_numbers = #tpu.dot_dimension_numbers<[1], [0], [0], [1], [0, 0, 1, 1], [], []>} : vector<8x16xf32>, vector<16x128xf32>, vector<8x128xf32> -> vector<8x128xf32>
    %11 = vector.broadcast %1 : vector<1x128xf32> to vector<8x128xf32>
    %12 = arith.addf %10, %11 : vector<8x128xf32>
    %cst_5 = arith.constant 0.000000e+00 : f32
    %13 = vector.broadcast %cst_5 : f32 to vector<8x128xf32>
    %14 = arith.cmpf oge, %12, %13 : vector<8x128xf32>
    %cst_6 = arith.constant 0.00999999977 : f32
    %15 = vector.broadcast %cst_6 : f32 to vector<8x128xf32>
    %16 = arith.mulf %15, %12 : vector<8x128xf32>
    %17 = arith.select %14, %12, %16 : vector<8x128xi1>, vector<8x128xf32>
    %cst_7 = arith.constant dense<0.000000e+00> : vector<128xf32>
    %18 = vector.multi_reduction <add>, %17, %cst_7 [0] : vector<8x128xf32> to vector<128xf32>
    %19 = vector.shape_cast %18 : vector<128xf32> to vector<1x128xf32>
    %20 = arith.mulf %17, %17 : vector<8x128xf32>
    %cst_8 = arith.constant dense<0.000000e+00> : vector<128xf32>
    %21 = vector.multi_reduction <add>, %20, %cst_8 [0] : vector<8x128xf32> to vector<128xf32>
    %22 = vector.shape_cast %21 : vector<128xf32> to vector<1x128xf32>
    %cst_9 = arith.constant 1.250000e-01 : f32
    %23 = vector.broadcast %cst_9 : f32 to vector<1x128xf32>
    %24 = arith.mulf %19, %23 : vector<1x128xf32>
    %cst_10 = arith.constant 1.250000e-01 : f32
    %25 = vector.broadcast %cst_10 : f32 to vector<1x128xf32>
    %26 = arith.mulf %22, %25 : vector<1x128xf32>
    %27 = arith.mulf %24, %24 : vector<1x128xf32>
    %28 = arith.subf %26, %27 : vector<1x128xf32>
    %cst_11 = arith.constant 0.000000e+00 : f32
    %29 = vector.broadcast %cst_11 : f32 to vector<1x128xf32>
    %30 = arith.maximumf %28, %29 : vector<1x128xf32>
    %cst_12 = arith.constant 9.99999974E-6 : f32
    %31 = vector.broadcast %cst_12 : f32 to vector<1x128xf32>
    %32 = arith.addf %30, %31 : vector<1x128xf32>
    %33 = math.rsqrt %32 : vector<1x128xf32>
    %34 = arith.mulf %2, %33 : vector<1x128xf32>
    %35 = arith.mulf %24, %34 : vector<1x128xf32>
    %36 = arith.subf %3, %35 : vector<1x128xf32>
    %37 = vector.broadcast %34 : vector<1x128xf32> to vector<8x128xf32>
    %38 = arith.mulf %17, %37 : vector<8x128xf32>
    %39 = vector.broadcast %36 : vector<1x128xf32> to vector<8x128xf32>
    %40 = arith.addf %38, %39 : vector<8x128xf32>
    %c0_13 = arith.constant 0 : index
    %c0_14 = arith.constant 0 : index
    %41 = vector.load %arg2[%c0_13, %c0_14] : memref<128x128xf32, #tpu.memory_space<vmem>>, vector<128x128xf32>
    %cst_15 = arith.constant dense<0.000000e+00> : vector<8x128xf32>
    %42 = tpu.matmul %40, %41, %cst_15 {dimension_numbers = #tpu.dot_dimension_numbers<[1], [0], [0], [1], [0, 0, 1, 1], [], []>} : vector<8x128xf32>, vector<128x128xf32>, vector<8x128xf32> -> vector<8x128xf32>
    %43 = vector.broadcast %4 : vector<1x128xf32> to vector<8x128xf32>
    %44 = arith.addf %42, %43 : vector<8x128xf32>
    %cst_16 = arith.constant 0.000000e+00 : f32
    %45 = vector.broadcast %cst_16 : f32 to vector<8x128xf32>
    %46 = arith.cmpf oge, %44, %45 : vector<8x128xf32>
    %cst_17 = arith.constant 0.00999999977 : f32
    %47 = vector.broadcast %cst_17 : f32 to vector<8x128xf32>
    %48 = arith.mulf %47, %44 : vector<8x128xf32>
    %49 = arith.select %46, %44, %48 : vector<8x128xi1>, vector<8x128xf32>
    %cst_18 = arith.constant dense<0.000000e+00> : vector<128xf32>
    %50 = vector.multi_reduction <add>, %49, %cst_18 [0] : vector<8x128xf32> to vector<128xf32>
    %51 = vector.shape_cast %50 : vector<128xf32> to vector<1x128xf32>
    %52 = arith.mulf %49, %49 : vector<8x128xf32>
    %cst_19 = arith.constant dense<0.000000e+00> : vector<128xf32>
    %53 = vector.multi_reduction <add>, %52, %cst_19 [0] : vector<8x128xf32> to vector<128xf32>
    %54 = vector.shape_cast %53 : vector<128xf32> to vector<1x128xf32>
    %cst_20 = arith.constant 1.250000e-01 : f32
    %55 = vector.broadcast %cst_20 : f32 to vector<1x128xf32>
    %56 = arith.mulf %51, %55 : vector<1x128xf32>
    %cst_21 = arith.constant 1.250000e-01 : f32
    %57 = vector.broadcast %cst_21 : f32 to vector<1x128xf32>
    %58 = arith.mulf %54, %57 : vector<1x128xf32>
    %59 = arith.mulf %56, %56 : vector<1x128xf32>
    %60 = arith.subf %58, %59 : vector<1x128xf32>
    %cst_22 = arith.constant 0.000000e+00 : f32
    %61 = vector.broadcast %cst_22 : f32 to vector<1x128xf32>
    %62 = arith.maximumf %60, %61 : vector<1x128xf32>
    %cst_23 = arith.constant 9.99999974E-6 : f32
    %63 = vector.broadcast %cst_23 : f32 to vector<1x128xf32>
    %64 = arith.addf %62, %63 : vector<1x128xf32>
    %65 = math.rsqrt %64 : vector<1x128xf32>
    %66 = arith.mulf %5, %65 : vector<1x128xf32>
    %67 = arith.mulf %56, %66 : vector<1x128xf32>
    %68 = arith.subf %6, %67 : vector<1x128xf32>
    %69 = vector.broadcast %66 : vector<1x128xf32> to vector<8x128xf32>
    %70 = arith.mulf %49, %69 : vector<8x128xf32>
    %71 = vector.broadcast %68 : vector<1x128xf32> to vector<8x128xf32>
    %72 = arith.addf %70, %71 : vector<8x128xf32>
    %c0_24 = arith.constant 0 : index
    %c0_25 = arith.constant 0 : index
    %73 = vector.load %arg3[%c0_24, %c0_25] : memref<128x128xf32, #tpu.memory_space<vmem>>, vector<128x128xf32>
    %cst_26 = arith.constant dense<0.000000e+00> : vector<8x128xf32>
    %74 = tpu.matmul %72, %73, %cst_26 {dimension_numbers = #tpu.dot_dimension_numbers<[1], [0], [0], [1], [0, 0, 1, 1], [], []>} : vector<8x128xf32>, vector<128x128xf32>, vector<8x128xf32> -> vector<8x128xf32>
    %75 = vector.broadcast %7 : vector<1x128xf32> to vector<8x128xf32>
    %76 = arith.addf %74, %75 : vector<8x128xf32>
    %77 = arith.negf %76 : vector<8x128xf32>
    %78 = math.exp %77 : vector<8x128xf32>
    %cst_27 = arith.constant 1.000000e+00 : f32
    %79 = vector.broadcast %cst_27 : f32 to vector<8x128xf32>
    %80 = arith.addf %79, %78 : vector<8x128xf32>
    %81 = arith.divf %79, %80 : vector<8x128xf32>
    %c0_28 = arith.constant 0 : index
    %c0_29 = arith.constant 0 : index
    %82 = vector.load %arg5[%c0_28, %c0_29] : memref<8x128xf32, #tpu.memory_space<vmem>>, vector<8x128xf32>
    tpu.vector_store %arg5[%c0_28, %c0_29], %81 {strides = array<i32>} : memref<8x128xf32, #tpu.memory_space<vmem>>, vector<8x128xf32>,
    return
  }
}

</mosaic_0001>

<llo_original>
// kernel: tpu_custom_call.1
$region0: #{tpu_custom_call.1}
  #allocation0 [shape = 'u32[]', space=smem, size = 0x4, offset = 0x4, fixed_abs, tag = 'smem constant byte address 0x4 - core index']
  #allocation1 [shape = 'u32[144,128]{1,0:T(1,128)}', space=vmem, size = 0x12000, scoped, tag = 'internal scratch']
  %s0 = inlined_call_operand.hbm [shape: f32[8,16], index: 0, kind: input, shape index: {}]
  %s1 = inlined_call_operand.hbm [shape: f32[16,128], index: 1, kind: input, shape index: {}]
  %s2 = inlined_call_operand.hbm [shape: f32[128,128], index: 2, kind: input, shape index: {}]
  %s3 = inlined_call_operand.hbm [shape: f32[128,128], index: 3, kind: input, shape index: {}]
  %s4 = inlined_call_operand.hbm [shape: f32[8,384], index: 4, kind: input, shape index: {}]
  %s5 = inlined_call_operand.hbm [shape: f32[8,128], index: 5, kind: output, shape index: {}]
  %s6 = sld [smem:[#allocation0]]
  $region50: #{tpu_custom_call.1} parent=0
    _
  %s8 = ssub.s32 1, %s6
  %s9 = scalar_select 0, %s8, %s6
  $region1: #{tpu_custom_call.1} parent=0
    #allocation2 [shape = 'u8[4096]{0}', space=vmem, size = 0x1000, scoped, tag = 'input window, operand 0, single buffered']
    #allocation3 [shape = 's32[1]{0}', space=sflag, size = 0x4, scoped, tag = 'scoped memory for tpu_custom_call.1']
    #allocation4 [shape = 's32[1]{0}', space=sflag, size = 0x4, scoped, tag = 'scoped memory for tpu_custom_call.1']
    #allocation5 [shape = 'u8[8192]{0}', space=vmem, size = 0x2000, scoped, tag = 'input window, operand 1, single buffered']
    #allocation6 [shape = 's32[1]{0}', space=sflag, size = 0x4, scoped, tag = 'scoped memory for tpu_custom_call.1']
    #allocation7 [shape = 'u8[65536]{0}', space=vmem, size = 0x10000, scoped, tag = 'input window, operand 2, single buffered']
    #allocation8 [shape = 'u8[65536]{0}', space=vmem, size = 0x10000, scoped, tag = 'input window, operand 3, single buffered']
    #allocation9 [shape = 's32[1]{0}', space=sflag, size = 0x4, scoped, tag = 'scoped memory for tpu_custom_call.1']
    #allocation10 [shape = 'u8[12288]{0}', space=vmem, size = 0x3000, scoped, tag = 'input window, operand 4, single buffered']
    #allocation11 [shape = 'u8[4096]{0}', space=vmem, size = 0x1000, scoped, tag = 'output window, operand 0, single buffered']
    %10 = vsyncpa [#allocation3], 0
    %11 = vsyncpa [#allocation6], 0
    %12 = vsyncpa [#allocation9], 0
    %13 = vsyncpa [#allocation4], 0
    // Predicated region
    $region2: #{tpu_custom_call.1} parent=1 // pred_check
      _
    $region3: #{tpu_custom_call.1} parent=1 // pred_check_branch
      %15 = sbr.rel (0) target = $region5
    $region4: #{tpu_custom_call.1} parent=1 // pred_region
      %s17 = ssub.s32 128, 128
      %18 = vsyncadd [#allocation3], %s17
      %s20 = sshll.u32 [#allocation2], 4
      %s21 = int_to_ptr.vmem [resolvable:$true] %s20
      %23 = dma.hbm_to_vmem [thread:$0]  %s0, 128, %s21, [#allocation3]
    $region5: #{tpu_custom_call.1} parent=1 // pred_fallthru
      _
    // Predicated region
    $region6: #{tpu_custom_call.1} parent=1 // pred_check
      _
    $region7: #{tpu_custom_call.1} parent=1 // pred_check_branch
      %25 = sbr.rel (0) target = $region9
    $region8: #{tpu_custom_call.1} parent=1 // pred_region
      %s27 = ssub.s32 256, 256
      %28 = vsyncadd [#allocation6], %s27
      %s29 = sshll.u32 [#allocation5], 4
      %s30 = int_to_ptr.vmem [resolvable:$true] %s29
      %35 = dma.hbm_to_vmem [thread:$0]  %s1, 256, %s30, [#allocation6], 128, 128, 8
    $region9: #{tpu_custom_call.1} parent=1 // pred_fallthru
      _
    // Predicated region
    $region10: #{tpu_custom_call.1} parent=1 // pred_check
      _
    $region11: #{tpu_custom_call.1} parent=1 // pred_check_branch
      %37 = sbr.rel (0) target = $region13
    $region12: #{tpu_custom_call.1} parent=1 // pred_region
      %s39 = ssub.s32 2048, 2048
      %40 = vsyncadd [#allocation6], %s39
      %s41 = sshll.u32 [#allocation7], 4
      %s42 = int_to_ptr.vmem [resolvable:$true] %s41
      %47 = dma.hbm_to_vmem [thread:$0]  %s2, 2048, %s42, [#allocation6], 128, 128, 8
    $region13: #{tpu_custom_call.1} parent=1 // pred_fallthru
      _
    // Predicated region
    $region14: #{tpu_custom_call.1} parent=1 // pred_check
      _
    $region15: #{tpu_custom_call.1} parent=1 // pred_check_branch
      %49 = sbr.rel (0) target = $region17
    $region16: #{tpu_custom_call.1} parent=1 // pred_region
      %s51 = ssub.s32 2048, 2048
      %52 = vsyncadd [#allocation9], %s51
      %s53 = sshll.u32 [#allocation8], 4
      %s54 = int_to_ptr.vmem [resolvable:$true] %s53
      %59 = dma.hbm_to_vmem [thread:$0]  %s3, 2048, %s54, [#allocation9], 128, 128, 8
    $region17: #{tpu_custom_call.1} parent=1 // pred_fallthru
      _
    // Predicated region
    $region18: #{tpu_custom_call.1} parent=1 // pred_check
      _
    $region19: #{tpu_custom_call.1} parent=1 // pred_check_branch
      %61 = sbr.rel (0) target = $region21
    $region20: #{tpu_custom_call.1} parent=1 // pred_region
      %s63 = ssub.s32 384, 384
      %64 = vsyncadd [#allocation9], %s63
      %s66 = sshll.u32 [#allocation10], 4
      %s67 = int_to_ptr.vmem [resolvable:$true] %s66
      %69 = dma.hbm_to_vmem [thread:$0]  %s4, 384, %s67, [#allocation9]
    $region21: #{tpu_custom_call.1} parent=1 // pred_fallthru
      _
    // Predicated region
    $region22: #{tpu_custom_call.1} parent=1 // pred_check
      _
    $region23: #{tpu_custom_call.1} parent=1 // pred_check_branch
      %71 = sbr.rel (0) target = $region25
    $region24: #{tpu_custom_call.1} parent=1 // pred_region
      %72 = dma.done [#allocation3], 128
    $region25: #{tpu_custom_call.1} parent=1 // pred_fallthru
      _
    // Predicated region
    $region26: #{tpu_custom_call.1} parent=1 // pred_check
      _
    $region27: #{tpu_custom_call.1} parent=1 // pred_check_branch
      %74 = sbr.rel (0) target = $region29
    $region28: #{tpu_custom_call.1} parent=1 // pred_region
      %75 = dma.done [#allocation6], 256
    $region29: #{tpu_custom_call.1} parent=1 // pred_fallthru
      _
    // Predicated region
    $region30: #{tpu_custom_call.1} parent=1 // pred_check
      _
    $region31: #{tpu_custom_call.1} parent=1 // pred_check_branch
      %77 = sbr.rel (0) target = $region33
    $region32: #{tpu_custom_call.1} parent=1 // pred_region
      %78 = dma.done [#allocation6], 2048
    $region33: #{tpu_custom_call.1} parent=1 // pred_fallthru
      _
    // Predicated region
    $region34: #{tpu_custom_call.1} parent=1 // pred_check
      _
    $region35: #{tpu_custom_call.1} parent=1 // pred_check_branch
      %80 = sbr.rel (0) target = $region37
    $region36: #{tpu_custom_call.1} parent=1 // pred_region
      %81 = dma.done [#allocation9], 2048
    $region37: #{tpu_custom_call.1} parent=1 // pred_fallthru
      _
    // Predicated region
    $region38: #{tpu_custom_call.1} parent=1 // pred_check
      _
    $region39: #{tpu_custom_call.1} parent=1 // pred_check_branch
      %83 = sbr.rel (0) target = $region41
    $region40: #{tpu_custom_call.1} parent=1 // pred_region
      %84 = dma.done [#allocation9], 384
    $region41: #{tpu_custom_call.1} parent=1 // pred_fallthru
      _
    %v85 = vld [vmem:[#allocation10] sm:$0xff]
    %v86 = vld [vmem:[#allocation10 + $0x8] sm:$0xff]
    %v87 = vld [vmem:[#allocation10 + $0x10] sm:$0xff]
    %v88 = vld [vmem:[#allocation2] sm:$0xff]
    %v89 = vld [vmem:[#allocation5] sm:$0xff]
    %v90 = vld [vmem:[#allocation5 + $0x8] sm:$0xff]
    %v91 = vlaneseq
    %v92 = vshrl.u32 %v91, 7
    %v93 = vsub.s32 0, %v92
    %v94 = vrot.slane %v85, %v93
    %vm95 = vcmask 130048
    %v97 = vsel %vm95, %v88, 0
    %99 = vmatprep.subr.mxu0 0.0
    %100 = vmatpush1.msra.mxu0 %v89
    %101 = vmatprep.subr.mxu0 0.0
    %102 = vmatpush1.msra.mxu0 %v90
    %103 = vmatprep.subr.mxu0 0.0
    %104 = vmatpush1.msra.mxu0 0.0
    %105 = vmatprep.subr.mxu0 0.0
    %106 = vmatpush1.msra.mxu0 0.0
    %107 = vmatprep.subr.mxu0 0.0
    %108 = vmatpush1.msra.mxu0 0.0
    %109 = vmatprep.subr.mxu0 0.0
    %110 = vmatpush1.msra.mxu0 0.0
    %111 = vmatprep.subr.mxu0 0.0
    %112 = vmatpush1.msra.mxu0 0.0
    %113 = vmatprep.subr.mxu0 0.0
    %114 = vmatpush1.msra.mxu0 0.0
    %115 = vmatprep.subr.mxu0 0.0
    %116 = vmatpush1.msra.mxu0 0.0
    %117 = vmatprep.subr.mxu0 0.0
    %118 = vmatpush1.msra.mxu0 0.0
    %119 = vmatprep.subr.mxu0 0.0
    %120 = vmatpush1.msra.mxu0 0.0
    %121 = vmatprep.subr.mxu0 0.0
    %122 = vmatpush1.msra.mxu0 0.0
    %123 = vmatprep.subr.mxu0 0.0
    %124 = vmatpush1.msra.mxu0 0.0
    %125 = vmatprep.subr.mxu0 0.0
    %126 = vmatpush1.msra.mxu0 0.0
    %127 = vmatprep.subr.mxu0 0.0
    %128 = vmatpush1.msra.mxu0 0.0
    %129 = vmatprep.subr.mxu0 0.0
    %130 = vmatpush1.msra.mxu0 0.0
    %131 = vmatprep.subr.mxu0 0.0
    %132 = vmatpush1.msra.mxu0 0.0
    %133 = vmatprep.subr.mxu0 0.0
    %134 = vmatpush1.msra.mxu0 0.0
    %135 = vmatprep.subr.mxu0 0.0
    %136 = vmatpush1.msra.mxu0 0.0
    %137 = vmatprep.subr.mxu0 0.0
    %138 = vmatpush1.msra.mxu0 0.0
    %139 = vmatprep.subr.mxu0 0.0
    %140 = vmatpush1.msra.mxu0 0.0
    %141 = vmatprep.subr.mxu0 0.0
    %142 = vmatpush1.msra.mxu0 0.0
    %143 = vmatprep.subr.mxu0 0.0
    %144 = vmatpush1.msra.mxu0 0.0
    %145 = vmatprep.subr.mxu0 0.0
    %146 = vmatpush1.msra.mxu0 0.0
    %147 = vmatprep.subr.mxu0 0.0
    %148 = vmatpush1.msra.mxu0 0.0
    %149 = vmatprep.subr.mxu0 0.0
    %150 = vmatpush1.msra.mxu0 0.0
    %151 = vmatprep.subr.mxu0 0.0
    %152 = vmatpush1.msra.mxu0 0.0
    %153 = vmatprep.subr.mxu0 0.0
    %154 = vmatpush1.msra.mxu0 0.0
    %155 = vmatprep.subr.mxu0 0.0
    %156 = vmatpush1.msra.mxu0 0.0
    %157 = vmatprep.subr.mxu0 0.0
    %158 = vmatpush1.msra.mxu0 0.0
    %159 = vmatprep.subr.mxu0 0.0
    %160 = vmatpush1.msra.mxu0 0.0
    %161 = vmatprep.subr.mxu0 0.0
    %162 = vmatpush1.msra.mxu0 0.0
    %163 = vmatprep.mubr.f32.mxu0 0.0
    %164 = vmatmul.mubr.f32.gmra.mrb[0].mxu0 %v97
    %v165 = vpop.f32.mrb[0].mxu0
    %v166 = vadd.f32 %v94, %v165
    %v167 = vpop.f32.mrb[0].mxu0
    %168 = vdwg.mxu0
    %vm169 = vcmp.ge.f32.partialorder %v166, 0.0
    %v170 = vmul.f32 %v166, 0.01
    %v171 = vsel %vm169, %v166, %v170
    %v172 = vrot.slane %v171, 4
    %v173 = vadd.f32 %v171, %v172
    %v174 = vrot.slane %v173, 2
    %v175 = vadd.f32 %v173, %v174
    %v176 = vrot.slane %v175, 1
    %v177 = vadd.f32 %v175, %v176
    %v178 = vmul.f32 %v171, %v171
    %v179 = vrot.slane %v178, 4
    %v180 = vadd.f32 %v178, %v179
    %v181 = vrot.slane %v180, 2
    %v182 = vadd.f32 %v180, %v181
    %v183 = vrot.slane %v182, 1
    %v184 = vadd.f32 %v182, %v183
    %v185 = vmul.f32 %v177, 0.125
    %v186 = vmul.f32 %v184, 0.125
    %v187 = vmul.f32 %v185, %v185
    %v188 = vsub.f32 %v186, %v187
    %v189 = vmax.f32 %v188, 0.0
    %v190 = vadd.f32 %v189, 1e-05
    %v191 = vrsqrt.pop %v190
    %v192 = vmul.f32 %v85, %v191
    %v193 = vmul.f32 %v185, %v192
    %v195 = vrot.slane %v193, 7
    %v197 = vsub.f32 %v85, %v195
    %v198 = vlaneseq
    %v199 = vshrl.u32 %v198, 7
    %v200 = vsub.s32 1, %v199
    %v201 = vrot.slane %v192, %v200
    %v202 = vmul.f32 %v171, %v201
    %v203 = vlaneseq
    %v204 = vshrl.u32 %v203, 7
    %v205 = vsub.s32 2, %v204
    %v206 = vrot.slane %v197, %v205
    %v207 = vadd.f32 %v202, %v206
    %v208 = vld [vmem:[#allocation7] sm:$0xff]
    %v209 = vld [vmem:[#allocation7 + $0x8] sm:$0xff]
    %v210 = vld [vmem:[#allocation7 + $0x10] sm:$0xff]
    %v211 = vld [vmem:[#allocation7 + $0x18] sm:$0xff]
    %v212 = vld [vmem:[#allocation7 + $0x20] sm:$0xff]
    %v213 = vld [vmem:[#allocation7 + $0x28] sm:$0xff]
    %v214 = vld [vmem:[#allocation7 + $0x30] sm:$0xff]
    %v215 = vld [vmem:[#allocation7 + $0x38] sm:$0xff]
    %v216 = vld [vmem:[#allocation7 + $0x40] sm:$0xff]
    %v217 = vld [vmem:[#allocation7 + $0x48] sm:$0xff]
    %v218 = vld [vmem:[#allocation7 + $0x50] sm:$0xff]
    %v219 = vld [vmem:[#allocation7 + $0x58] sm:$0xff]
    %v220 = vld [vmem:[#allocation7 + $0x60] sm:$0xff]
    %v221 = vld [vmem:[#allocation7 + $0x68] sm:$0xff]
    %v222 = vld [vmem:[#allocation7 + $0x70] sm:$0xff]
    %v223 = vld [vmem:[#allocation7 + $0x78] sm:$0xff]
    %v224 = vlaneseq
    %v225 = vshrl.u32 %v224, 7
    %v226 = vsub.s32 0, %v225
    %v227 = vrot.slane %v86, %v226
    %228 = vmatprep.subr.mxu0 0.0
    %229 = vmatpush1.msra.mxu0 %v208
    %230 = vmatprep.subr.mxu0 0.0
    %231 = vmatpush1.msra.mxu0 %v209
    %232 = vmatprep.subr.mxu0 0.0
    %233 = vmatpush1.msra.mxu0 %v210
    %234 = vmatprep.subr.mxu0 0.0
    %235 = vmatpush1.msra.mxu0 %v211
    %236 = vmatprep.subr.mxu0 0.0
    %237 = vmatpush1.msra.mxu0 %v212
    %238 = vmatprep.subr.mxu0 0.0
    %239 = vmatpush1.msra.mxu0 %v213
    %240 = vmatprep.subr.mxu0 0.0
    %241 = vmatpush1.msra.mxu0 %v214
    %242 = vmatprep.subr.mxu0 0.0
    %243 = vmatpush1.msra.mxu0 %v215
    %244 = vmatprep.subr.mxu0 0.0
    %245 = vmatpush1.msra.mxu0 %v216
    %246 = vmatprep.subr.mxu0 0.0
    %247 = vmatpush1.msra.mxu0 %v217
    %248 = vmatprep.subr.mxu0 0.0
    %249 = vmatpush1.msra.mxu0 %v218
    %250 = vmatprep.subr.mxu0 0.0
    %251 = vmatpush1.msra.mxu0 %v219
    %252 = vmatprep.subr.mxu0 0.0
    %253 = vmatpush1.msra.mxu0 %v220
    %254 = vmatprep.subr.mxu0 0.0
    %255 = vmatpush1.msra.mxu0 %v221
    %256 = vmatprep.subr.mxu0 0.0
    %257 = vmatpush1.msra.mxu0 %v222
    %258 = vmatprep.subr.mxu0 0.0
    %259 = vmatpush1.msra.mxu0 %v223
    %260 = vmatprep.subr.mxu0 0.0
    %261 = vmatpush1.msra.mxu0 0.0
    %262 = vmatprep.subr.mxu0 0.0
    %263 = vmatpush1.msra.mxu0 0.0
    %264 = vmatprep.subr.mxu0 0.0
    %265 = vmatpush1.msra.mxu0 0.0
    %266 = vmatprep.subr.mxu0 0.0
    %267 = vmatpush1.msra.mxu0 0.0
    %268 = vmatprep.subr.mxu0 0.0
    %269 = vmatpush1.msra.mxu0 0.0
    %270 = vmatprep.subr.mxu0 0.0
    %271 = vmatpush1.msra.mxu0 0.0
    %272 = vmatprep.subr.mxu0 0.0
    %273 = vmatpush1.msra.mxu0 0.0
    %274 = vmatprep.subr.mxu0 0.0
    %275 = vmatpush1.msra.mxu0 0.0
    %276 = vmatprep.subr.mxu0 0.0
    %277 = vmatpush1.msra.mxu0 0.0
    %278 = vmatprep.subr.mxu0 0.0
    %279 = vmatpush1.msra.mxu0 0.0
    %280 = vmatprep.subr.mxu0 0.0
    %281 = vmatpush1.msra.mxu0 0.0
    %282 = vmatprep.subr.mxu0 0.0
    %283 = vmatpush1.msra.mxu0 0.0
    %284 = vmatprep.subr.mxu0 0.0
    %285 = vmatpush1.msra.mxu0 0.0
    %286 = vmatprep.subr.mxu0 0.0
    %287 = vmatpush1.msra.mxu0 0.0
    %288 = vmatprep.subr.mxu0 0.0
    %289 = vmatpush1.msra.mxu0 0.0
    %290 = vmatprep.subr.mxu0 0.0
    %291 = vmatpush1.msra.mxu0 0.0
    %292 = vmatprep.mubr.f32.mxu0 0.0
    %293 = vmatmul.mubr.f32.gmra.mrb[0].mxu0 %v207
    %v294 = vpop.f32.mrb[0].mxu0
    %v295 = vadd.f32 %v227, %v294
    %v296 = vpop.f32.mrb[0].mxu0
    %297 = vdwg.mxu0
    %vm298 = vcmp.ge.f32.partialorder %v295, 0.0
    %v299 = vmul.f32 %v295, 0.01
    %v300 = vsel %vm298, %v295, %v299
    %v301 = vrot.slane %v300, 4
    %v302 = vadd.f32 %v300, %v301
    %v303 = vrot.slane %v302, 2
    %v304 = vadd.f32 %v302, %v303
    %v305 = vrot.slane %v304, 1
    %v306 = vadd.f32 %v304, %v305
    %v307 = vmul.f32 %v300, %v300
    %v308 = vrot.slane %v307, 4
    %v309 = vadd.f32 %v307, %v308
    %v310 = vrot.slane %v309, 2
    %v311 = vadd.f32 %v309, %v310
    %v312 = vrot.slane %v311, 1
    %v313 = vadd.f32 %v311, %v312
    %v314 = vmul.f32 %v306, 0.125
    %v315 = vmul.f32 %v313, 0.125
    %v316 = vmul.f32 %v314, %v314
    %v317 = vsub.f32 %v315, %v316
    %v318 = vmax.f32 %v317, 0.0
    %v319 = vadd.f32 %v318, 1e-05
    %v320 = vrsqrt.pop %v319
    %v321 = vmul.f32 %v86, %v320
    %v322 = vmul.f32 %v314, %v321
    %v324 = vrot.slane %v322, 7
    %v326 = vsub.f32 %v86, %v324
    %v327 = vlaneseq
    %v328 = vshrl.u32 %v327, 7
    %v329 = vsub.s32 1, %v328
    %v330 = vrot.slane %v321, %v329
    %v331 = vmul.f32 %v300, %v330
    %v332 = vlaneseq
    %v333 = vshrl.u32 %v332, 7
    %v334 = vsub.s32 2, %v333
    %v335 = vrot.slane %v326, %v334
    %v336 = vadd.f32 %v331, %v335
    %v337 = vld [vmem:[#allocation8] sm:$0xff]
    %v338 = vld [vmem:[#allocation8 + $0x8] sm:$0xff]
    %v339 = vld [vmem:[#allocation8 + $0x10] sm:$0xff]
    %v340 = vld [vmem:[#allocation8 + $0x18] sm:$0xff]
    %v341 = vld [vmem:[#allocation8 + $0x20] sm:$0xff]
    %v342 = vld [vmem:[#allocation8 + $0x28] sm:$0xff]
    %v343 = vld [vmem:[#allocation8 + $0x30] sm:$0xff]
    %v344 = vld [vmem:[#allocation8 + $0x38] sm:$0xff]
    %v345 = vld [vmem:[#allocation8 + $0x40] sm:$0xff]
    %v346 = vld [vmem:[#allocation8 + $0x48] sm:$0xff]
    %v347 = vld [vmem:[#allocation8 + $0x50] sm:$0xff]
    %v348 = vld [vmem:[#allocation8 + $0x58] sm:$0xff]
    %v349 = vld [vmem:[#allocation8 + $0x60] sm:$0xff]
    %v350 = vld [vmem:[#allocation8 + $0x68] sm:$0xff]
    %v351 = vld [vmem:[#allocation8 + $0x70] sm:$0xff]
    %v352 = vld [vmem:[#allocation8 + $0x78] sm:$0xff]
    %v353 = vlaneseq
    %v354 = vshrl.u32 %v353, 7
    %v355 = vsub.s32 0, %v354
    %v356 = vrot.slane %v87, %v355
    %357 = vmatprep.subr.mxu0 0.0
    %358 = vmatpush1.msra.mxu0 %v337
    %359 = vmatprep.subr.mxu0 0.0
    %360 = vmatpush1.msra.mxu0 %v338
    %361 = vmatprep.subr.mxu0 0.0
    %362 = vmatpush1.msra.mxu0 %v339
    %363 = vmatprep.subr.mxu0 0.0
    %364 = vmatpush1.msra.mxu0 %v340
    %365 = vmatprep.subr.mxu0 0.0
    %366 = vmatpush1.msra.mxu0 %v341
    %367 = vmatprep.subr.mxu0 0.0
    %368 = vmatpush1.msra.mxu0 %v342
    %369 = vmatprep.subr.mxu0 0.0
    %370 = vmatpush1.msra.mxu0 %v343
    %371 = vmatprep.subr.mxu0 0.0
    %372 = vmatpush1.msra.mxu0 %v344
    %373 = vmatprep.subr.mxu0 0.0
    %374 = vmatpush1.msra.mxu0 %v345
    %375 = vmatprep.subr.mxu0 0.0
    %376 = vmatpush1.msra.mxu0 %v346
    %377 = vmatprep.subr.mxu0 0.0
    %378 = vmatpush1.msra.mxu0 %v347
    %379 = vmatprep.subr.mxu0 0.0
    %380 = vmatpush1.msra.mxu0 %v348
    %381 = vmatprep.subr.mxu0 0.0
    %382 = vmatpush1.msra.mxu0 %v349
    %383 = vmatprep.subr.mxu0 0.0
    %384 = vmatpush1.msra.mxu0 %v350
    %385 = vmatprep.subr.mxu0 0.0
    %386 = vmatpush1.msra.mxu0 %v351
    %387 = vmatprep.subr.mxu0 0.0
    %388 = vmatpush1.msra.mxu0 %v352
    %389 = vmatprep.subr.mxu0 0.0
    %390 = vmatpush1.msra.mxu0 0.0
    %391 = vmatprep.subr.mxu0 0.0
    %392 = vmatpush1.msra.mxu0 0.0
    %393 = vmatprep.subr.mxu0 0.0
    %394 = vmatpush1.msra.mxu0 0.0
    %395 = vmatprep.subr.mxu0 0.0
    %396 = vmatpush1.msra.mxu0 0.0
    %397 = vmatprep.subr.mxu0 0.0
    %398 = vmatpush1.msra.mxu0 0.0
    %399 = vmatprep.subr.mxu0 0.0
    %400 = vmatpush1.msra.mxu0 0.0
    %401 = vmatprep.subr.mxu0 0.0
    %402 = vmatpush1.msra.mxu0 0.0
    %403 = vmatprep.subr.mxu0 0.0
    %404 = vmatpush1.msra.mxu0 0.0
    %405 = vmatprep.subr.mxu0 0.0
    %406 = vmatpush1.msra.mxu0 0.0
    %407 = vmatprep.subr.mxu0 0.0
    %408 = vmatpush1.msra.mxu0 0.0
    %409 = vmatprep.subr.mxu0 0.0
    %410 = vmatpush1.msra.mxu0 0.0
    %411 = vmatprep.subr.mxu0 0.0
    %412 = vmatpush1.msra.mxu0 0.0
    %413 = vmatprep.subr.mxu0 0.0
    %414 = vmatpush1.msra.mxu0 0.0
    %415 = vmatprep.subr.mxu0 0.0
    %416 = vmatpush1.msra.mxu0 0.0
    %417 = vmatprep.subr.mxu0 0.0
    %418 = vmatpush1.msra.mxu0 0.0
    %419 = vmatprep.subr.mxu0 0.0
    %420 = vmatpush1.msra.mxu0 0.0
    %421 = vmatprep.mubr.f32.mxu0 0.0
    %422 = vmatmul.mubr.f32.gmra.mrb[0].mxu0 %v336
    %v423 = vpop.f32.mrb[0].mxu0
    %v424 = vadd.f32 %v356, %v423
    %v425 = vpop.f32.mrb[0].mxu0
    %426 = vdwg.mxu0
    %v427 = vxor.u32 %v424, 2147483648
    %v428 = vmul.f32 %v427, 1.442695
    %v429 = vpow.pop %v428
    %v430 = vadd.f32 %v429, 1.0
    %v431 = vrcp.pop %v430
    %v432 = vmul.f32 1.0, %v431
    %433 = vst [vmem:[#allocation11] sm:$0xff] %v432
    // Predicated region
    $region42: #{tpu_custom_call.1} parent=1 // pred_check
      _
    $region43: #{tpu_custom_call.1} parent=1 // pred_check_branch
      %435 = sbr.rel (0) target = $region45
    $region44: #{tpu_custom_call.1} parent=1 // pred_region
      %s437 = ssub.s32 128, 128
      %438 = vsyncadd [#allocation4], %s437
      %s440 = sshll.u32 [#allocation11], 4
      %s441 = int_to_ptr.vmem [resolvable:$true] %s440
      %443 = dma.vmem_to_hbm [thread:$0]  %s441, 128, %s5, [#allocation4]
    $region45: #{tpu_custom_call.1} parent=1 // pred_fallthru
      _
    // Predicated region
    $region46: #{tpu_custom_call.1} parent=1 // pred_check
      _
    $region47: #{tpu_custom_call.1} parent=1 // pred_check_branch
      %445 = sbr.rel (0) target = $region49
    $region48: #{tpu_custom_call.1} parent=1 // pred_region
      %446 = dma.done [#allocation4], 128
    $region49: #{tpu_custom_call.1} parent=1 // pred_fallthru
      _
    %447 = vsyncpa [#allocation3], 1
    %448 = vsyncpa [#allocation6], 1
    %449 = vsyncpa [#allocation9], 1
    %450 = vsyncpa [#allocation4], 1

</llo_original>
